<compile_context>
chip_gen: v6e
topology: v6e:2x2x1
jax: 0.10.0
libtpu: 0.0.40
codegen_flags: <defaults>
</compile_context>

<pallas_src>
import functools

import jax
import jax.numpy as jnp
from jax.experimental import pallas as pl
from jax.experimental.pallas import tpu as pltpu

LANE = 128
SUBLANE = 8


def _rel_smooth_l1(p, t, beta, eps):
    """Elementwise relative smooth-L1 in f32 (VPU-only: abs/cmp/select/mul/div)."""
    p = p.astype(jnp.float32)
    t = t.astype(jnp.float32)
    d = jnp.abs(p - t)
    if beta > 0.0:
        sl1 = jnp.where(d < beta, (0.5 / beta) * d * d, d - 0.5 * beta)
    else:  # beta == 0 -> plain L1 (PyTorch convention)
        sl1 = d
    return sl1 / jnp.maximum(jnp.abs(t), eps)


# ---------------------------------------------------------------------------
# Kernel 1: reduced path ('mean' / 'sum') — accumulate a (8,128) partial sum
# directly in the resident output block (init/accumulate via pl.when).
# ---------------------------------------------------------------------------
def _partial_sum_kernel(p_ref, t_ref, o_ref, *, beta, eps, rows_valid,
                        tile_rows, mask_needed):
    i = pl.program_id(0)

    @pl.when(i == 0)
    def _():
        o_ref[...] = jnp.zeros_like(o_ref)

    loss = _rel_smooth_l1(p_ref[...], t_ref[...], beta, eps)

    if mask_needed:  # static: only emitted when the last block is ragged
        row = jax.lax.broadcasted_iota(jnp.int32, loss.shape, 0) + i * tile_rows
        loss = jnp.where(row < rows_valid, loss, 0.0)

    # Row-group reduce on the VPU (sublane-aligned reshape; no XLU, no scalar
    # read-modify-write chain). Final 8x128 -> scalar happens outside.
    o_ref[...] += loss.reshape(tile_rows // SUBLANE, SUBLANE, LANE).sum(axis=0)


# ---------------------------------------------------------------------------
# Kernel 2: reduction='none' — elementwise relative smooth-L1.
# ---------------------------------------------------------------------------
def _elementwise_kernel(p_ref, t_ref, o_ref, *, beta, eps):
    o_ref[...] = _rel_smooth_l1(p_ref[...], t_ref[...], beta, eps).astype(
        o_ref.dtype)


def _to_slab(x, rows_p):
    """View x as a (rows_p, 128) slab in its native dtype.

    Free (reshape only) when x.size == rows_p*128; otherwise a single minimal
    zero-pad copy (zero padding contributes 0 loss).
    """
    flat = jnp.ravel(x)
    pad = rows_p * LANE - flat.size
    if pad:
        flat = jnp.pad(flat, (0, pad))
    return flat.reshape(rows_p, LANE)


@functools.partial(jax.jit,
                   static_argnames=("reduction", "beta", "eps", "tile_rows"))
def relative_smooth_l1_loss(prediction, target, reduction="mean", beta=1.0,
                            eps=1e-8, tile_rows=2048):
    assert prediction.shape == target.shape
    if beta < 0:
        raise ValueError("beta must be non-negative")
    beta = float(beta)
    eps = float(eps)

    n = prediction.size
    out_dtype = jnp.promote_types(prediction.dtype, target.dtype)

    rows = pl.cdiv(n, LANE)
    rows_p = pl.cdiv(rows, SUBLANE) * SUBLANE          # minimal (8,128) pad
    needs_pad = rows_p * LANE != n

    # Row tile: multiple of 8, clamped to the slab height.
    tile_rows = max(SUBLANE, (min(int(tile_rows), rows_p) // SUBLANE) * SUBLANE)
    num_blocks = pl.cdiv(rows_p, tile_rows)
    mask_needed = num_blocks * tile_rows != rows_p      # ragged last block

    p2d = _to_slab(prediction, rows_p)
    t2d = _to_slab(target, rows_p)

    itemsize = max(jnp.dtype(prediction.dtype).itemsize,
                   jnp.dtype(target.dtype).itemsize)
    blk_in = tile_rows * LANE * itemsize               # one input block

    in_specs = [pl.BlockSpec((tile_rows, LANE), lambda i: (i, 0)),
                pl.BlockSpec((tile_rows, LANE), lambda i: (i, 0))]

    if reduction == "none":
        blk_out = tile_rows * LANE * jnp.dtype(out_dtype).itemsize
        vmem_limit = int(min(48 << 20,
                             max(32 << 20, 2 * (4 * blk_in + 2 * blk_out))))
        out2d = pl.pallas_call(
            functools.partial(_elementwise_kernel, beta=beta, eps=eps),
            out_shape=jax.ShapeDtypeStruct((rows_p, LANE), out_dtype),
            grid_spec=pltpu.PrefetchScalarGridSpec(
                num_scalar_prefetch=0,
                grid=(num_blocks,),
                in_specs=in_specs,
                out_specs=pl.BlockSpec((tile_rows, LANE), lambda i: (i, 0)),
            ),
            compiler_params=pltpu.CompilerParams(
                dimension_semantics=("parallel",),
                vmem_limit_bytes=vmem_limit,
            ),
        )(p2d, t2d)
        if needs_pad:
            return out2d.reshape(-1)[:n].reshape(prediction.shape)
        return out2d.reshape(prediction.shape)

    if reduction not in ("mean", "sum"):
        raise ValueError(f"Unsupported reduction: {reduction}")

    vmem_limit = int(min(48 << 20, max(32 << 20, 2 * 4 * blk_in)))
    partial = pl.pallas_call(
        functools.partial(_partial_sum_kernel, beta=beta, eps=eps,
                          rows_valid=rows_p, tile_rows=tile_rows,
                          mask_needed=mask_needed),
        out_shape=jax.ShapeDtypeStruct((SUBLANE, LANE), jnp.float32),
        grid_spec=pltpu.PrefetchScalarGridSpec(
            num_scalar_prefetch=0,
            grid=(num_blocks,),
            in_specs=in_specs,
            out_specs=pl.BlockSpec((SUBLANE, LANE), lambda i: (0, 0)),
        ),
        compiler_params=pltpu.CompilerParams(
            dimension_semantics=("arbitrary",),
            vmem_limit_bytes=vmem_limit,
        ),
    )(p2d, t2d)

    s = jnp.sum(partial)                 # tiny 8x128 reduce in plain JAX
    if reduction == "mean":
        s = s / jnp.float32(n)
    return s.astype(out_dtype)


def _reference(prediction, target, reduction="mean", beta=1.0, eps=1e-8):
    p = prediction.astype(jnp.float32)
    t = target.astype(jnp.float32)
    d = jnp.abs(p - t)
    if beta > 0:
        sl1 = jnp.where(d < beta, 0.5 * d * d / beta, d - 0.5 * beta)
    else:
        sl1 = d
    loss = sl1 / jnp.maximum(jnp.abs(t), eps)
    if reduction == "none":
        return loss
    if reduction == "sum":
        return jnp.sum(loss)
    return jnp.mean(loss)


if __name__ == "__main__":
    key = jax.random.PRNGKey(0)
    kp, kt, kp2, kt2, kp3, kt3 = jax.random.split(key, 6)

    # NCHW-style demo (no padding: 2048 elements -> free (16,128) reshape)
    shape = (2, 4, 16, 16)
    prediction = jax.random.normal(kp, shape, dtype=jnp.float32)
    target = jax.random.normal(kt, shape, dtype=jnp.float32)

    out_mean = jax.block_until_ready(
        relative_smooth_l1_loss(prediction, target, "mean"))
    out_sum = jax.block_until_ready(
        relative_smooth_l1_loss(prediction, target, "sum"))
    out_none = jax.block_until_ready(
        relative_smooth_l1_loss(prediction, target, "none"))

    assert jnp.allclose(out_mean, _reference(prediction, target, "mean"),
                        rtol=1e-5, atol=1e-5)
    assert jnp.allclose(out_sum, _reference(prediction, target, "sum"),
                        rtol=1e-5, atol=1e-4)
    assert out_none.shape == shape
    assert jnp.allclose(out_none, _reference(prediction, target, "none"),
                        rtol=1e-5, atol=1e-5)

    # Docstring-style (3,5) shape: exercises minimal zero-pad path + beta != 1.
    p2 = jax.random.normal(kp2, (3, 5), dtype=jnp.float32)
    t2 = jax.random.normal(kt2, (3, 5), dtype=jnp.float32)
    o2 = jax.block_until_ready(
        relative_smooth_l1_loss(p2, t2, "mean", beta=0.5))
    assert jnp.allclose(o2, _reference(p2, t2, "mean", beta=0.5),
                        rtol=1e-5, atol=1e-5)

    # Ragged-last-block path: 20 rows padded to 24, tile_rows=16 -> masked tail.
    p3 = jax.random.normal(kp3, (20, 128), dtype=jnp.float32)
    t3 = jax.random.normal(kt3, (20, 128), dtype=jnp.float32)
    o3s = jax.block_until_ready(
        relative_smooth_l1_loss(p3, t3, "sum", tile_rows=16))
    o3n = jax.block_until_ready(
        relative_smooth_l1_loss(p3, t3, "none", tile_rows=16))
    assert jnp.allclose(o3s, _reference(p3, t3, "sum"), rtol=1e-5, atol=1e-4)
    assert jnp.allclose(o3n, _reference(p3, t3, "none"), rtol=1e-5, atol=1e-5)

    print("KERNEL_OK")
</pallas_src>

<mosaic_0001>
module attributes {stable_mosaic.version = 11 : i64} {
  func.func @_partial_sum_kernel(%arg0: i32, %arg1: memref<16x128xf32, #tpu.memory_space<vmem>>, %arg2: memref<16x128xf32, #tpu.memory_space<vmem>>, %arg3: memref<8x128xf32, #tpu.memory_space<vmem>>) attributes {dimension_semantics = [#tpu.dimension_semantics<arbitrary>], iteration_bounds = array<i64: 1>, scalar_prefetch = 0 : i64, scratch_operands = 0 : i64, tpu.core_type = #tpu.core_type<tc>, window_params = [{transform_indices = @transform_0, window_bounds = array<i64: 16, 128>}, {transform_indices = @transform_1, window_bounds = array<i64: 16, 128>}, {pipeline_mode = #tpu.pipeline_mode<synchronous>, transform_indices = @transform_2, window_bounds = array<i64: 8, 128>}]} {
    %c0_i32 = arith.constant 0 : i32
    %0 = arith.cmpi eq, %arg0, %c0_i32 : i32
    %1 = arith.extui %0 : i1 to i32
    %c0_i32_0 = arith.constant 0 : i32
    %2 = arith.cmpi ne, %1, %c0_i32_0 : i32
    scf.if %2 {
      %cst_12 = arith.constant 0.000000e+00 : f32
      %24 = vector.broadcast %cst_12 : f32 to vector<8x128xf32>
      %c0_13 = arith.constant 0 : index
      %c0_14 = arith.constant 0 : index
      %25 = vector.load %arg3[%c0_13, %c0_14] : memref<8x128xf32, #tpu.memory_space<vmem>>, vector<8x128xf32>
      tpu.vector_store %arg3[%c0_13, %c0_14], %24 {strides = array<i32>} : memref<8x128xf32, #tpu.memory_space<vmem>>, vector<8x128xf32>,
    } else {
    }
    %c0 = arith.constant 0 : index
    %c0_1 = arith.constant 0 : index
    %3 = vector.load %arg1[%c0, %c0_1] : memref<16x128xf32, #tpu.memory_space<vmem>>, vector<16x128xf32>
    %c0_2 = arith.constant 0 : index
    %c0_3 = arith.constant 0 : index
    %4 = vector.load %arg2[%c0_2, %c0_3] : memref<16x128xf32, #tpu.memory_space<vmem>>, vector<16x128xf32>
    %5 = arith.subf %3, %4 : vector<16x128xf32>
    %6 = math.absf %5 : vector<16x128xf32>
    %cst = arith.constant 1.000000e+00 : f32
    %7 = vector.broadcast %cst : f32 to vector<16x128xf32>
    %8 = arith.cmpf olt, %6, %7 : vector<16x128xf32>
    %cst_4 = arith.constant 5.000000e-01 : f32
    %9 = vector.broadcast %cst_4 : f32 to vector<16x128xf32>
    %10 = arith.mulf %9, %6 : vector<16x128xf32>
    %11 = arith.mulf %10, %6 : vector<16x128xf32>
    %cst_5 = arith.constant 5.000000e-01 : f32
    %12 = vector.broadcast %cst_5 : f32 to vector<16x128xf32>
    %13 = arith.subf %6, %12 : vector<16x128xf32>
    %14 = arith.select %8, %11, %13 : vector<16x128xi1>, vector<16x128xf32>
    %15 = math.absf %4 : vector<16x128xf32>
    %cst_6 = arith.constant 9.99999993E-9 : f32
    %16 = vector.broadcast %cst_6 : f32 to vector<16x128xf32>
    %17 = arith.maximumf %15, %16 : vector<16x128xf32>
    %18 = arith.divf %14, %17 : vector<16x128xf32>
    %c0_7 = arith.constant 0 : index
    %c0_8 = arith.constant 0 : index
    %19 = vector.load %arg3[%c0_7, %c0_8] : memref<8x128xf32, #tpu.memory_space<vmem>>, vector<8x128xf32>
    %20 = vector.shape_cast %18 : vector<16x128xf32> to vector<2x8x128xf32>
    %cst_9 = arith.constant dense<0.000000e+00> : vector<8x128xf32>
    %21 = vector.multi_reduction <add>, %20, %cst_9 [0] : vector<2x8x128xf32> to vector<8x128xf32>
    %22 = arith.addf %19, %21 : vector<8x128xf32>
    %c0_10 = arith.constant 0 : index
    %c0_11 = arith.constant 0 : index
    %23 = vector.load %arg3[%c0_10, %c0_11] : memref<8x128xf32, #tpu.memory_space<vmem>>, vector<8x128xf32>
    tpu.vector_store %arg3[%c0_10, %c0_11], %22 {strides = array<i32>} : memref<8x128xf32, #tpu.memory_space<vmem>>, vector<8x128xf32>,
    return
  }
  func.func @transform_0(%arg0: i32) -> (i32, i32) {
    %c0_i32 = arith.constant 0 : i32
    %c0_i32_0 = arith.constant 0 : i32
    return %arg0, %c0_i32 : i32, i32
  }
  func.func @transform_1(%arg0: i32) -> (i32, i32) {
    %c0_i32 = arith.constant 0 : i32
    %c0_i32_0 = arith.constant 0 : i32
    return %arg0, %c0_i32 : i32, i32
  }
  func.func @transform_2(%arg0: i32) -> (i32, i32) {
    %c0_i32 = arith.constant 0 : i32
    %c0_i32_0 = arith.constant 0 : i32
    %c0_i32_1 = arith.constant 0 : i32
    return %c0_i32, %c0_i32_0 : i32, i32
  }
}

</mosaic_0001>

<llo_original>
// kernel: relative_smooth_l1_loss.1
$region0: #{relative_smooth_l1_loss.1}
  #allocation0 [shape = 'u32[]', space=smem, size = 0x4, offset = 0x4, fixed_abs, tag = 'smem constant byte address 0x4 - core index']
  #allocation1 [shape = 'u32[144,128]{1,0:T(1,128)}', space=vmem, size = 0x12000, scoped, tag = 'internal scratch']
  %s0 = inlined_call_operand.vmem [shape: f32[16,128], index: 0, kind: input, shape index: {}]
  %s1 = inlined_call_operand.vmem [shape: f32[16,128], index: 1, kind: input, shape index: {}]
  %s2 = inlined_call_operand.vmem [shape: f32[8,128], index: 2, kind: output, shape index: {}]
  %s3 = sld [smem:[#allocation0]]
  $region22: #{relative_smooth_l1_loss.1} parent=0
    _
  %s5 = ssub.s32 1, %s3
  %s6 = scalar_select 0, %s5, %s3
  // Predicated region
  $region2: #{relative_smooth_l1_loss.1} parent=0 // pred_check
    _
  $region3: #{relative_smooth_l1_loss.1} parent=0 // pred_check_branch
    %8 = sbr.rel (0) target = $region5
  $region4: #{relative_smooth_l1_loss.1} parent=0 // pred_region
    _
  $region5: #{relative_smooth_l1_loss.1} parent=0 // pred_fallthru
    _
  // Predicated region
  $region6: #{relative_smooth_l1_loss.1} parent=0 // pred_check
    _
  $region7: #{relative_smooth_l1_loss.1} parent=0 // pred_check_branch
    %10 = sbr.rel (0) target = $region9
  $region8: #{relative_smooth_l1_loss.1} parent=0 // pred_region
    _
  $region9: #{relative_smooth_l1_loss.1} parent=0 // pred_fallthru
    _
  %p11 = scmp.eq.s32.totalorder 0, 0
  // Predicated region
  $region10: #{relative_smooth_l1_loss.1} parent=0 // pred_check
    %p12 = pneg %p11
  $region11: #{relative_smooth_l1_loss.1} parent=0 // pred_check_branch
    %14 = sbr.rel (%p12) target = $region13
  $region12: #{relative_smooth_l1_loss.1} parent=0 // pred_region
    %15 = vst [vmem:[%s2] sm:$0xff] 0.0
  $region13: #{relative_smooth_l1_loss.1} parent=0 // pred_fallthru
    _
  %v16 = vld [vmem:[%s0] sm:$0xff]
  %v17 = vld [vmem:[%s0 + $0x8] sm:$0xff]
  %v18 = vld [vmem:[%s1] sm:$0xff]
  %v19 = vld [vmem:[%s1 + $0x8] sm:$0xff]
  %v20 = vsub.f32 %v16, %v18
  %v21 = vsub.f32 %v17, %v19
  %v22 = vand.u32 2147483647, %v20
  %v23 = vand.u32 2147483647, %v21
  %vm24 = vcmp.lt.f32.partialorder %v22, 1.0
  %vm25 = vcmp.lt.f32.partialorder %v23, 1.0
  %v26 = vmul.f32 %v22, 0.5
  %v27 = vmul.f32 %v23, 0.5
  %v28 = vmul.f32 %v26, %v22
  %v29 = vmul.f32 %v27, %v23
  %v30 = vsub.f32 %v22, 0.5
  %v31 = vsub.f32 %v23, 0.5
  %v32 = vsel %vm24, %v28, %v30
  %v33 = vsel %vm25, %v29, %v31
  %v34 = vand.u32 2147483647, %v18
  %v35 = vand.u32 2147483647, %v19
  %v36 = vmax.f32 %v34, 1e-08
  %v37 = vmax.f32 %v35, 1e-08
  %v38 = vrcp.pop %v36
  %v39 = vmul.f32 %v32, %v38
  %v40 = vrcp.pop %v37
  %v41 = vmul.f32 %v33, %v40
  %v42 = vld [vmem:[%s2] sm:$0xff]
  %v43 = vadd.f32 %v39, %v41
  %v44 = vadd.f32 %v42, %v43
  %45 = vst [vmem:[%s2] sm:$0xff] %v44
  // Predicated region
  $region14: #{relative_smooth_l1_loss.1} parent=0 // pred_check
    _
  $region15: #{relative_smooth_l1_loss.1} parent=0 // pred_check_branch
    %47 = sbr.rel (0) target = $region17
  $region16: #{relative_smooth_l1_loss.1} parent=0 // pred_region
    _
  $region17: #{relative_smooth_l1_loss.1} parent=0 // pred_fallthru
    _
  // Predicated region
  $region18: #{relative_smooth_l1_loss.1} parent=0 // pred_check
    _
  $region19: #{relative_smooth_l1_loss.1} parent=0 // pred_check_branch
    %49 = sbr.rel (0) target = $region21
  $region20: #{relative_smooth_l1_loss.1} parent=0 // pred_region
    _
  $region21: #{relative_smooth_l1_loss.1} parent=0 // pred_fallthru
    _

</llo_original>
